<compile_context>
chip_gen: v7x
topology: tpu7x:2x2x1
jax: 0.10.0
libtpu: 0.0.40
codegen_flags: <defaults>
</compile_context>

<pallas_src>
import numpy as np
import jax
import jax.numpy as jnp
from jax.experimental import pallas as pl
from jax.experimental.pallas import tpu as pltpu

# -----------------------------------------------------------------------------
# Synthetic config (mirrors the LlavaConfig fields the module reads)
# -----------------------------------------------------------------------------
MM_HIDDEN = 32            # config.mm_hidden_size  (vision feature dim, C)
HIDDEN = 128              # config.hidden_size     (text hidden dim) — lane-dense
NUM_FRAMES = 2            # config.num_frames
POOL_STRIDE = 2           # config.mm_spatial_pool_stride
PATCHES_PER_SIDE = 8      # image_size // patch_size  (H == W)
VOCAB = 128               # config.vocab_size
SEQ_LEN = 48              # extend sequence length (single request, prefix_len=0)

POOLED_SIDE = PATCHES_PER_SIDE // POOL_STRIDE
PATCHES_PER_FRAME = POOLED_SIDE * POOLED_SIDE
IMAGE_FEATURE_LEN = NUM_FRAMES * PATCHES_PER_FRAME   # rows scattered into embeds (32)
WIN = POOL_STRIDE * POOL_STRIDE                       # pooling window size (4)
K_IN = WIN * MM_HIDDEN                                # folded matmul K (128)


# -----------------------------------------------------------------------------
# Fused kernel: (avgpool∘linear1) + GELU + linear2 → embed gather + ds-scatter
# -----------------------------------------------------------------------------
def _llavavid_fused_kernel(start_ref,                      # scalar prefetch (SMEM)
                           x_ref, w1_ref, b1_ref, w2_ref, b2_ref,
                           ids_ref, emb_ref,               # VMEM inputs
                           out_ref):                       # VMEM output
    # ---- resampler (AvgPool folded into W1') + multi_modal_projector ----
    # x_ref: (P, s*s*C) bf16 pooling windows; w1_ref = tile(w1, ss)/ss  (bf16)
    h = jnp.dot(x_ref[...], w1_ref[...],
                preferred_element_type=jnp.float32) + b1_ref[...]
    h = jax.nn.gelu(h, approximate=True)   # TODO(synk): exact-erf in HF checkpoint
    feats = jnp.dot(h.astype(jnp.bfloat16), w2_ref[...],
                    preferred_element_type=jnp.float32) + b2_ref[...]
    # feats: (IMAGE_FEATURE_LEN, HIDDEN) == image_feature.flatten(0, 1)

    seq = out_ref.shape[0]
    vocab = emb_ref.shape[0]
    num_img = feats.shape[0]

    # ---- embed_tokens lookup via one-hot MXU matmul ----
    # input_ids.clamp_(min=0, max=vocab_size - 1)
    ids = jnp.clip(ids_ref[...], 0, vocab - 1)                        # (seq, 1)
    cols_v = jax.lax.broadcasted_iota(jnp.int32, (seq, vocab), 1)
    tok_onehot = (cols_v == ids).astype(jnp.bfloat16)                 # (seq, vocab)
    out_ref[...] = jnp.dot(tok_onehot, emb_ref[...],
                           preferred_element_type=jnp.float32).astype(out_ref.dtype)

    # ---- contiguous image-feature scatter: input_embeds[l:r] = feats ----
    # Clamp guards the ds store (VMEM stores have no bounds check).
    start = jnp.clip(start_ref[0], 0, seq - num_img)
    out_ref[pl.ds(start, num_img), :] = feats.astype(out_ref.dtype)


# -----------------------------------------------------------------------------
# One-time weight preparation (hoisted out of the per-call path)
# -----------------------------------------------------------------------------
def prepare_weights(w1, b1, w2, b2, embed_table):
    """Fold AvgPool2d into linear_1 and pre-cast MXU operands to bf16.
    x_flat @ (tile(w1, ss)/ss) == avgpool(x) @ w1."""
    ss = POOL_STRIDE * POOL_STRIDE
    w1p = (jnp.tile(w1, (ss, 1)) / float(ss)).astype(jnp.bfloat16)    # (s*s*C, HIDDEN)
    b1_2d = b1.reshape(1, HIDDEN).astype(jnp.float32)
    w2_bf = w2.astype(jnp.bfloat16)
    b2_2d = b2.reshape(1, HIDDEN).astype(jnp.float32)
    emb_bf = embed_table.astype(jnp.bfloat16)
    return w1p, b1_2d, w2_bf, b2_2d, emb_bf


# -----------------------------------------------------------------------------
# Per-call wrapper (extend path up to input_embeds)
# -----------------------------------------------------------------------------
def llavavid_extend_embeds(selected_image_feature, prepared, input_ids, image_offset):
    """selected_image_feature: (num_frames, H*W, MM_HIDDEN) — vision features
    after the 'patch' feature-select (CLS token already dropped).
    prepared: output of prepare_weights().
    Returns input_embeds (seq, HIDDEN) with image features scattered in."""
    w1p, b1_2d, w2_bf, b2_2d, emb_bf = prepared
    f, hw, c = selected_image_feature.shape
    s = POOL_STRIDE
    hh = ww = PATCHES_PER_SIDE
    assert hw == hh * ww and c == MM_HIDDEN

    # Glue: per-output-patch pooling windows, flattened channels-last.
    # (f, h*w, c) -> (f, h/s, s, w/s, s, c) -> (f, h/s, w/s, s, s, c)
    #             -> (f*(h/s)*(w/s), s*s*c)   — same row-major (h', w') order as
    # the PyTorch permute->AvgPool2d->flatten(2).transpose(1,2) path.
    x = selected_image_feature.reshape(f, hh // s, s, ww // s, s, c)
    x = x.transpose(0, 1, 3, 2, 4, 5).reshape(f * (hh // s) * (ww // s), s * s * c)
    x = x.astype(jnp.bfloat16)
    p_total = x.shape[0]
    assert p_total == IMAGE_FEATURE_LEN

    seq = input_ids.shape[0]
    if isinstance(image_offset, (int, np.integer)):
        # guard: a bad offset would silently corrupt rows via the ds store
        assert 0 <= image_offset and image_offset + p_total <= seq
    ids2d = input_ids.astype(jnp.int32).reshape(seq, 1)
    # start = start_idx + (image_offset - prefix_len); here prefix_len = start_idx = 0
    start = jnp.asarray([image_offset], dtype=jnp.int32)

    return pl.pallas_call(
        _llavavid_fused_kernel,
        out_shape=jax.ShapeDtypeStruct((seq, HIDDEN), jnp.float32),
        grid_spec=pltpu.PrefetchScalarGridSpec(
            num_scalar_prefetch=1,
            grid=(1,),
            in_specs=[
                pl.BlockSpec((p_total, s * s * c), lambda i, st: (0, 0)),   # x (bf16)
                pl.BlockSpec((s * s * c, HIDDEN), lambda i, st: (0, 0)),    # W1' (bf16)
                pl.BlockSpec((1, HIDDEN), lambda i, st: (0, 0)),            # b1 (f32)
                pl.BlockSpec((HIDDEN, HIDDEN), lambda i, st: (0, 0)),       # W2 (bf16)
                pl.BlockSpec((1, HIDDEN), lambda i, st: (0, 0)),            # b2 (f32)
                pl.BlockSpec((seq, 1), lambda i, st: (0, 0)),               # ids (i32)
                pl.BlockSpec((VOCAB, HIDDEN), lambda i, st: (0, 0)),        # table (bf16)
            ],
            out_specs=pl.BlockSpec((seq, HIDDEN), lambda i, st: (0, 0)),
        ),
        compiler_params=pltpu.CompilerParams(
            dimension_semantics=("arbitrary",)),
    )(start, x, w1p, b1_2d, w2_bf, b2_2d, ids2d, emb_bf)


# -----------------------------------------------------------------------------
# Pure-JAX reference of the same path (module semantics, for correctness check)
# -----------------------------------------------------------------------------
def reference(selected, w1, b1, w2, b2, embed_table, input_ids, image_offset):
    s = POOL_STRIDE
    f = NUM_FRAMES
    hh = ww = PATCHES_PER_SIDE
    x = selected.reshape(f, hh // s, s, ww // s, s, MM_HIDDEN).mean(axis=(2, 4))
    x = x.reshape(f, -1, MM_HIDDEN)
    h = jax.nn.gelu(jnp.einsum("fpc,ch->fph", x, w1) + b1, approximate=True)
    feats = jnp.einsum("fph,hk->fpk", h, w2) + b2
    feats = feats.reshape(-1, HIDDEN)                    # image_feature.flatten(0, 1)
    ids = jnp.clip(input_ids, 0, VOCAB - 1)
    emb = embed_table[ids]
    emb = emb.at[image_offset:image_offset + feats.shape[0]].set(feats)
    return emb


# -----------------------------------------------------------------------------
# Driver
# -----------------------------------------------------------------------------
if __name__ == "__main__":
    key = jax.random.PRNGKey(0)
    ks = jax.random.split(key, 8)

    # Vision-tower output after 'patch' feature select (CLS dropped): (F, H*W, C)
    selected = jax.random.normal(
        ks[0], (NUM_FRAMES, PATCHES_PER_SIDE * PATCHES_PER_SIDE, MM_HIDDEN), jnp.float32)

    # multi_modal_projector weights (linear_1: C->HIDDEN, linear_2: HIDDEN->HIDDEN)
    w1 = jax.random.normal(ks[1], (MM_HIDDEN, HIDDEN), jnp.float32) * 0.05
    b1 = jax.random.normal(ks[2], (HIDDEN,), jnp.float32) * 0.05
    w2 = jax.random.normal(ks[3], (HIDDEN, HIDDEN), jnp.float32) * 0.05
    b2 = jax.random.normal(ks[4], (HIDDEN,), jnp.float32) * 0.05

    # language_model.model.embed_tokens weight
    embed_table = jax.random.normal(ks[5], (VOCAB, HIDDEN), jnp.float32) * 0.1

    # extend-mode token ids (includes out-of-range ids to exercise the clamp)
    input_ids = jax.random.randint(ks[6], (SEQ_LEN,), -3, VOCAB + 3, dtype=jnp.int32)
    image_offset = 5  # image token offset; prefix_len = 0, extend_start_loc = 0

    # --- one-time weight prep (avgpool fold + bf16 casts), hoisted off hot path ---
    prepared = jax.tree_util.tree_map(jax.block_until_ready,
                                      prepare_weights(w1, b1, w2, b2, embed_table))

    # --- Pallas pipeline (forward extend path up to input_embeds, one kernel) ---
    input_embeds = llavavid_extend_embeds(selected, prepared, input_ids, image_offset)
    jax.block_until_ready(input_embeds)

    # --- check against pure-JAX f32 reference (bf16 MXU operands => loose tol) ---
    ref = reference(selected, w1, b1, w2, b2, embed_table, input_ids, image_offset)
    np.testing.assert_allclose(np.asarray(input_embeds), np.asarray(ref),
                               rtol=2e-2, atol=2e-2)

    print("KERNEL_OK")
</pallas_src>

<mosaic_0001>
module attributes {stable_mosaic.version = 11 : i64} {
  func.func @_llavavid_fused_kernel(%arg0: i32, %arg1: memref<1xi32, #tpu.memory_space<smem>>, %arg2: memref<32x128xbf16, #tpu.memory_space<vmem>>, %arg3: memref<128x128xbf16, #tpu.memory_space<vmem>>, %arg4: memref<1x128xf32, #tpu.memory_space<vmem>>, %arg5: memref<128x128xbf16, #tpu.memory_space<vmem>>, %arg6: memref<1x128xf32, #tpu.memory_space<vmem>>, %arg7: memref<48x1xi32, #tpu.memory_space<vmem>>, %arg8: memref<128x128xbf16, #tpu.memory_space<vmem>>, %arg9: memref<48x128xf32, #tpu.memory_space<vmem>>) attributes {dimension_semantics = [#tpu.dimension_semantics<arbitrary>], iteration_bounds = array<i64: 1>, scalar_prefetch = 1 : i64, scratch_operands = 0 : i64, tpu.core_type = #tpu.core_type<tc>, window_params = [{pipeline_mode = #tpu.pipeline_mode<synchronous>, transform_indices = @transform_0, window_bounds = array<i64: 32, 128>}, {pipeline_mode = #tpu.pipeline_mode<synchronous>, transform_indices = @transform_1, window_bounds = array<i64: 128, 128>}, {pipeline_mode = #tpu.pipeline_mode<synchronous>, transform_indices = @transform_2, window_bounds = array<i64: 1, 128>}, {pipeline_mode = #tpu.pipeline_mode<synchronous>, transform_indices = @transform_3, window_bounds = array<i64: 128, 128>}, {pipeline_mode = #tpu.pipeline_mode<synchronous>, transform_indices = @transform_4, window_bounds = array<i64: 1, 128>}, {pipeline_mode = #tpu.pipeline_mode<synchronous>, transform_indices = @transform_5, window_bounds = array<i64: 48, 1>}, {pipeline_mode = #tpu.pipeline_mode<synchronous>, transform_indices = @transform_6, window_bounds = array<i64: 128, 128>}, {pipeline_mode = #tpu.pipeline_mode<synchronous>, transform_indices = @transform_7, window_bounds = array<i64: 48, 128>}]} {
    %c0 = arith.constant 0 : index
    %c0_0 = arith.constant 0 : index
    %0 = vector.load %arg2[%c0, %c0_0] : memref<32x128xbf16, #tpu.memory_space<vmem>>, vector<32x128xbf16>
    %c0_1 = arith.constant 0 : index
    %c0_2 = arith.constant 0 : index
    %1 = vector.load %arg3[%c0_1, %c0_2] : memref<128x128xbf16, #tpu.memory_space<vmem>>, vector<128x128xbf16>
    %cst = arith.constant dense<0.000000e+00> : vector<32x128xf32>
    %2 = tpu.matmul %0, %1, %cst {dimension_numbers = #tpu.dot_dimension_numbers<[1], [0], [0], [1], [0, 0, 1, 1], [], []>} : vector<32x128xbf16>, vector<128x128xbf16>, vector<32x128xf32> -> vector<32x128xf32>
    %c0_3 = arith.constant 0 : index
    %c0_4 = arith.constant 0 : index
    %3 = vector.load %arg4[%c0_3, %c0_4] : memref<1x128xf32, #tpu.memory_space<vmem>>, vector<1x128xf32>
    %4 = vector.broadcast %3 : vector<1x128xf32> to vector<32x128xf32>
    %5 = arith.addf %2, %4 : vector<32x128xf32>
    %6 = arith.mulf %5, %5 : vector<32x128xf32>
    %7 = arith.mulf %5, %6 : vector<32x128xf32>
    %cst_5 = arith.constant 4.471500e-02 : f32
    %8 = vector.broadcast %cst_5 : f32 to vector<32x128xf32>
    %9 = arith.mulf %8, %7 : vector<32x128xf32>
    %10 = arith.addf %5, %9 : vector<32x128xf32>
    %cst_6 = arith.constant 0.797884583 : f32
    %11 = vector.broadcast %cst_6 : f32 to vector<32x128xf32>
    %12 = arith.mulf %11, %10 : vector<32x128xf32>
    %13 = math.tanh %12 : vector<32x128xf32>
    %cst_7 = arith.constant 1.000000e+00 : f32
    %14 = vector.broadcast %cst_7 : f32 to vector<32x128xf32>
    %15 = arith.addf %14, %13 : vector<32x128xf32>
    %cst_8 = arith.constant 5.000000e-01 : f32
    %16 = vector.broadcast %cst_8 : f32 to vector<32x128xf32>
    %17 = arith.mulf %16, %15 : vector<32x128xf32>
    %18 = arith.mulf %5, %17 : vector<32x128xf32>
    %19 = arith.truncf %18 : vector<32x128xf32> to vector<32x128xbf16>
    %c0_9 = arith.constant 0 : index
    %c0_10 = arith.constant 0 : index
    %20 = vector.load %arg5[%c0_9, %c0_10] : memref<128x128xbf16, #tpu.memory_space<vmem>>, vector<128x128xbf16>
    %cst_11 = arith.constant dense<0.000000e+00> : vector<32x128xf32>
    %21 = tpu.matmul %19, %20, %cst_11 {dimension_numbers = #tpu.dot_dimension_numbers<[1], [0], [0], [1], [0, 0, 1, 1], [], []>} : vector<32x128xbf16>, vector<128x128xbf16>, vector<32x128xf32> -> vector<32x128xf32>
    %c0_12 = arith.constant 0 : index
    %c0_13 = arith.constant 0 : index
    %22 = vector.load %arg6[%c0_12, %c0_13] : memref<1x128xf32, #tpu.memory_space<vmem>>, vector<1x128xf32>
    %23 = vector.broadcast %22 : vector<1x128xf32> to vector<32x128xf32>
    %24 = arith.addf %21, %23 : vector<32x128xf32>
    %c0_14 = arith.constant 0 : index
    %c0_15 = arith.constant 0 : index
    %25 = vector.load %arg7[%c0_14, %c0_15] : memref<48x1xi32, #tpu.memory_space<vmem>>, vector<48x1xi32>
    %c0_i32 = arith.constant 0 : i32
    %c127_i32 = arith.constant 127 : i32
    %26 = vector.broadcast %c0_i32 : i32 to vector<48x1xi32>
    %27 = arith.maxsi %26, %25 : vector<48x1xi32>
    %28 = vector.broadcast %c127_i32 : i32 to vector<48x1xi32>
    %29 = arith.minsi %28, %27 : vector<48x1xi32>
    %30 = tpu.iota {dimensions = array<i32: 1>} : vector<48x128xi32>
    %31 = vector.broadcast %29 : vector<48x1xi32> to vector<48x128xi32>
    %32 = arith.cmpi eq, %30, %31 : vector<48x128xi32>
    %33 = arith.extui %32 : vector<48x128xi1> to vector<48x128xi32>
    %34 = arith.sitofp %33 : vector<48x128xi32> to vector<48x128xf32>
    %35 = arith.truncf %34 : vector<48x128xf32> to vector<48x128xbf16>
    %c0_16 = arith.constant 0 : index
    %c0_17 = arith.constant 0 : index
    %36 = vector.load %arg8[%c0_16, %c0_17] : memref<128x128xbf16, #tpu.memory_space<vmem>>, vector<128x128xbf16>
    %cst_18 = arith.constant dense<0.000000e+00> : vector<48x128xf32>
    %37 = tpu.matmul %35, %36, %cst_18 {dimension_numbers = #tpu.dot_dimension_numbers<[1], [0], [0], [1], [0, 0, 1, 1], [], []>} : vector<48x128xbf16>, vector<128x128xbf16>, vector<48x128xf32> -> vector<48x128xf32>
    %c0_19 = arith.constant 0 : index
    %c0_20 = arith.constant 0 : index
    %38 = vector.load %arg9[%c0_19, %c0_20] : memref<48x128xf32, #tpu.memory_space<vmem>>, vector<48x128xf32>
    tpu.vector_store %arg9[%c0_19, %c0_20], %37 {strides = array<i32>} : memref<48x128xf32, #tpu.memory_space<vmem>>, vector<48x128xf32>,
    %c0_21 = arith.constant 0 : index
    %39 = memref.load %arg1[%c0_21] : memref<1xi32, #tpu.memory_space<smem>>
    %c0_i32_22 = arith.constant 0 : i32
    %c16_i32 = arith.constant 16 : i32
    %40 = arith.maxsi %c0_i32_22, %39 : i32
    %41 = arith.minsi %c16_i32, %40 : i32
    %42 = arith.index_cast %41 : i32 to index
    %c0_23 = arith.constant 0 : index
    %43 = vector.load %arg9[%42, %c0_23] : memref<48x128xf32, #tpu.memory_space<vmem>>, vector<32x128xf32>
    tpu.vector_store %arg9[%42, %c0_23], %24 {strides = array<i32>} : memref<48x128xf32, #tpu.memory_space<vmem>>, vector<32x128xf32>,
    return
  }
  func.func @transform_0(%arg0: i32, %arg1: memref<1xi32, #tpu.memory_space<smem>>) -> (i32, i32) {
    %c0_i32 = arith.constant 0 : i32
    %c0_i32_0 = arith.constant 0 : i32
    %c0_i32_1 = arith.constant 0 : i32
    return %c0_i32, %c0_i32_0 : i32, i32
  }
  func.func @transform_1(%arg0: i32, %arg1: memref<1xi32, #tpu.memory_space<smem>>) -> (i32, i32) {
    %c0_i32 = arith.constant 0 : i32
    %c0_i32_0 = arith.constant 0 : i32
    %c0_i32_1 = arith.constant 0 : i32
    return %c0_i32, %c0_i32_0 : i32, i32
  }
  func.func @transform_2(%arg0: i32, %arg1: memref<1xi32, #tpu.memory_space<smem>>) -> (i32, i32) {
    %c0_i32 = arith.constant 0 : i32
    %c0_i32_0 = arith.constant 0 : i32
    %c0_i32_1 = arith.constant 0 : i32
    return %c0_i32, %c0_i32_0 : i32, i32
  }
  func.func @transform_3(%arg0: i32, %arg1: memref<1xi32, #tpu.memory_space<smem>>) -> (i32, i32) {
    %c0_i32 = arith.constant 0 : i32
    %c0_i32_0 = arith.constant 0 : i32
    %c0_i32_1 = arith.constant 0 : i32
    return %c0_i32, %c0_i32_0 : i32, i32
  }
  func.func @transform_4(%arg0: i32, %arg1: memref<1xi32, #tpu.memory_space<smem>>) -> (i32, i32) {
    %c0_i32 = arith.constant 0 : i32
    %c0_i32_0 = arith.constant 0 : i32
    %c0_i32_1 = arith.constant 0 : i32
    return %c0_i32, %c0_i32_0 : i32, i32
  }
  func.func @transform_5(%arg0: i32, %arg1: memref<1xi32, #tpu.memory_space<smem>>) -> (i32, i32) {
    %c0_i32 = arith.constant 0 : i32
    %c0_i32_0 = arith.constant 0 : i32
    %c0_i32_1 = arith.constant 0 : i32
    return %c0_i32, %c0_i32_0 : i32, i32
  }
  func.func @transform_6(%arg0: i32, %arg1: memref<1xi32, #tpu.memory_space<smem>>) -> (i32, i32) {
    %c0_i32 = arith.constant 0 : i32
    %c0_i32_0 = arith.constant 0 : i32
    %c0_i32_1 = arith.constant 0 : i32
    return %c0_i32, %c0_i32_0 : i32, i32
  }
  func.func @transform_7(%arg0: i32, %arg1: memref<1xi32, #tpu.memory_space<smem>>) -> (i32, i32) {
    %c0_i32 = arith.constant 0 : i32
    %c0_i32_0 = arith.constant 0 : i32
    %c0_i32_1 = arith.constant 0 : i32
    return %c0_i32, %c0_i32_0 : i32, i32
  }
}

</mosaic_0001>

<llo_original>
// kernel: tpu_custom_call.1
$region0: #{tpu_custom_call.1}
  #allocation0 [shape = 'u32[]', space=smem, size = 0x4, offset = 0x4, fixed_abs, tag = 'smem constant byte address 0x4 - core index']
  #allocation1 [shape = 'u32[144,128]{1,0:T(1,128)}', space=vmem, size = 0x12000, scoped, tag = 'internal scratch']
  #allocation2 [shape = 's32[1]{0}', space=sflag, size = 0x4, scoped, tag = 'scoped memory for tpu_custom_call.1']
  #allocation3 [shape = 's32[1]{0:T(128)S(6)}', space=smem, size = 0x200, scoped, tag = 'prefetched SMEM operand 0']
  %s0 = inlined_call_operand.<no memory space> [shape: s32[1], index: 0, kind: input, shape index: {}]
  %s1 = inlined_call_operand.hbm [shape: bf16[32,128], index: 1, kind: input, shape index: {}]
  %s2 = inlined_call_operand.hbm [shape: bf16[128,128], index: 2, kind: input, shape index: {}]
  %s3 = inlined_call_operand.hbm [shape: f32[1,128], index: 3, kind: input, shape index: {}]
  %s4 = inlined_call_operand.vmem [shape: bf16[128,128], index: 4, kind: input, shape index: {}]
  %s5 = inlined_call_operand.vmem [shape: f32[1,128], index: 5, kind: input, shape index: {}]
  %s6 = inlined_call_operand.vmem [shape: s32[48,1], index: 6, kind: input, shape index: {}]
  %s7 = inlined_call_operand.hbm [shape: bf16[128,128], index: 7, kind: input, shape index: {}]
  %s8 = inlined_call_operand.hbm [shape: f32[48,128], index: 8, kind: output, shape index: {}]
  %s9 = sld [smem:[#allocation0]]
  $region54: #{tpu_custom_call.1} parent=0
    _
  %s11 = ssub.s32 1, %s9
  %s12 = scalar_select 0, %s11, %s9
  %13 = sst [smem:[#allocation3]] %s0
  $region1: #{tpu_custom_call.1} parent=0
    #allocation4 [shape = 'u8[8192]{0}', space=vmem, size = 0x2000, scoped, tag = 'input window, operand 1, single buffered']
    #allocation5 [shape = 's32[1]{0}', space=sflag, size = 0x4, scoped, tag = 'scoped memory for tpu_custom_call.1']
    #allocation6 [shape = 's32[1]{0}', space=sflag, size = 0x4, scoped, tag = 'scoped memory for tpu_custom_call.1']
    #allocation7 [shape = 'u8[32768]{0}', space=vmem, size = 0x8000, scoped, tag = 'input window, operand 2, single buffered']
    #allocation8 [shape = 's32[1]{0}', space=sflag, size = 0x4, scoped, tag = 'scoped memory for tpu_custom_call.1']
    #allocation9 [shape = 'u8[512]{0}', space=vmem, size = 0x400, scoped, tag = 'input window, operand 3, single buffered']
    #allocation10 [shape = 'u8[32768]{0}', space=vmem, size = 0x8000, scoped, tag = 'input window, operand 7, single buffered']
    #allocation11 [shape = 's32[1]{0}', space=sflag, size = 0x4, scoped, tag = 'scoped memory for tpu_custom_call.1']
    #allocation12 [shape = 'u8[24576]{0}', space=vmem, size = 0x6000, scoped, tag = 'output window, operand 0, single buffered']
    %14 = vsyncpa [#allocation5], 0
    %15 = vsyncpa [#allocation8], 0
    %16 = vsyncpa [#allocation11], 0
    %17 = vsyncpa [#allocation6], 0
    // Predicated region
    $region2: #{tpu_custom_call.1} parent=1 // pred_check
      _
    $region3: #{tpu_custom_call.1} parent=1 // pred_check_branch
      %19 = sbr.rel (0) target = $region5
    $region4: #{tpu_custom_call.1} parent=1 // pred_region
      %s21 = ssub.s32 256, 256
      %22 = vsyncadd [#allocation5], %s21
      %s23 = sshll.u32 [#allocation4], 4
      %s24 = int_to_ptr.vmem [resolvable:$true] %s23
      %29 = dma.hbm_to_vmem [thread:$0]  %s1, 256, %s24, [#allocation5], 64, 64, 4
    $region5: #{tpu_custom_call.1} parent=1 // pred_fallthru
      _
    // Predicated region
    $region6: #{tpu_custom_call.1} parent=1 // pred_check
      _
    $region7: #{tpu_custom_call.1} parent=1 // pred_check_branch
      %31 = sbr.rel (0) target = $region9
    $region8: #{tpu_custom_call.1} parent=1 // pred_region
      %s33 = ssub.s32 1024, 1024
      %34 = vsyncadd [#allocation8], %s33
      %s35 = sshll.u32 [#allocation7], 4
      %s36 = int_to_ptr.vmem [resolvable:$true] %s35
      %41 = dma.hbm_to_vmem [thread:$0]  %s2, 1024, %s36, [#allocation8], 64, 64, 4
    $region9: #{tpu_custom_call.1} parent=1 // pred_fallthru
      _
    // Predicated region
    $region10: #{tpu_custom_call.1} parent=1 // pred_check
      _
    $region11: #{tpu_custom_call.1} parent=1 // pred_check_branch
      %43 = sbr.rel (0) target = $region13
    $region12: #{tpu_custom_call.1} parent=1 // pred_region
      %s45 = ssub.s32 16, 16
      %46 = vsyncadd [#allocation8], %s45
      %s48 = sshll.u32 [#allocation9], 4
      %s49 = int_to_ptr.vmem [resolvable:$true] %s48
      %51 = dma.hbm_to_vmem [thread:$0]  %s3, 16, %s49, [#allocation8]
    $region13: #{tpu_custom_call.1} parent=1 // pred_fallthru
      _
    // Predicated region
    $region14: #{tpu_custom_call.1} parent=1 // pred_check
      _
    $region15: #{tpu_custom_call.1} parent=1 // pred_check_branch
      %53 = sbr.rel (0) target = $region17
    $region16: #{tpu_custom_call.1} parent=1 // pred_region
      _
    $region17: #{tpu_custom_call.1} parent=1 // pred_fallthru
      _
    // Predicated region
    $region18: #{tpu_custom_call.1} parent=1 // pred_check
      _
    $region19: #{tpu_custom_call.1} parent=1 // pred_check_branch
      %55 = sbr.rel (0) target = $region21
    $region20: #{tpu_custom_call.1} parent=1 // pred_region
      _
    $region21: #{tpu_custom_call.1} parent=1 // pred_fallthru
      _
    // Predicated region
    $region22: #{tpu_custom_call.1} parent=1 // pred_check
      _
    $region23: #{tpu_custom_call.1} parent=1 // pred_check_branch
      %57 = sbr.rel (0) target = $region25
    $region24: #{tpu_custom_call.1} parent=1 // pred_region
      _
    $region25: #{tpu_custom_call.1} parent=1 // pred_fallthru
      _
    // Predicated region
    $region26: #{tpu_custom_call.1} parent=1 // pred_check
      _
    $region27: #{tpu_custom_call.1} parent=1 // pred_check_branch
      %59 = sbr.rel (0) target = $region29
    $region28: #{tpu_custom_call.1} parent=1 // pred_region
      %s61 = ssub.s32 1024, 1024
      %62 = vsyncadd [#allocation11], %s61
      %s63 = sshll.u32 [#allocation10], 4
      %s64 = int_to_ptr.vmem [resolvable:$true] %s63
      %69 = dma.hbm_to_vmem [thread:$0]  %s7, 1024, %s64, [#allocation11], 64, 64, 4
    $region29: #{tpu_custom_call.1} parent=1 // pred_fallthru
      _
    // Predicated region
    $region30: #{tpu_custom_call.1} parent=1 // pred_check
      _
    $region31: #{tpu_custom_call.1} parent=1 // pred_check_branch
      %71 = sbr.rel (0) target = $region33
    $region32: #{tpu_custom_call.1} parent=1 // pred_region
      %72 = dma.done [#allocation5], 256
    $region33: #{tpu_custom_call.1} parent=1 // pred_fallthru
      _
    // Predicated region
    $region34: #{tpu_custom_call.1} parent=1 // pred_check
      _
    $region35: #{tpu_custom_call.1} parent=1 // pred_check_branch
      %74 = sbr.rel (0) target = $region37
    $region36: #{tpu_custom_call.1} parent=1 // pred_region
      %75 = dma.done [#allocation8], 1024
    $region37: #{tpu_custom_call.1} parent=1 // pred_fallthru
      _
    // Predicated region
    $region38: #{tpu_custom_call.1} parent=1 // pred_check
      _
    $region39: #{tpu_custom_call.1} parent=1 // pred_check_branch
      %77 = sbr.rel (0) target = $region41
    $region40: #{tpu_custom_call.1} parent=1 // pred_region
      %78 = dma.done [#allocation8], 16
    $region41: #{tpu_custom_call.1} parent=1 // pred_fallthru
      _
    // Predicated region
    $region42: #{tpu_custom_call.1} parent=1 // pred_check
      _
    $region43: #{tpu_custom_call.1} parent=1 // pred_check_branch
      %80 = sbr.rel (0) target = $region45
    $region44: #{tpu_custom_call.1} parent=1 // pred_region
      %81 = dma.done [#allocation11], 1024
    $region45: #{tpu_custom_call.1} parent=1 // pred_fallthru
      _
    %v83 = vld [vmem:[#allocation4] sm:$0xf]
    %v84 = vld [vmem:[#allocation4 + $0x4] sm:$0xf]
    %v85 = vld [vmem:[#allocation4 + $0x8] sm:$0xf]
    %v86 = vld [vmem:[#allocation4 + $0xc] sm:$0xf]
    %v87 = vld [vmem:[#allocation7] sm:$0xf]
    %v88 = vld [vmem:[#allocation7 + $0x4] sm:$0xf]
    %v89 = vld [vmem:[#allocation7 + $0x8] sm:$0xf]
    %v90 = vld [vmem:[#allocation7 + $0xc] sm:$0xf]
    %v91 = vld [vmem:[#allocation7 + $0x10] sm:$0xf]
    %v92 = vld [vmem:[#allocation7 + $0x14] sm:$0xf]
    %v93 = vld [vmem:[#allocation7 + $0x18] sm:$0xf]
    %v94 = vld [vmem:[#allocation7 + $0x1c] sm:$0xf]
    %v95 = vld [vmem:[#allocation7 + $0x20] sm:$0xf]
    %v96 = vld [vmem:[#allocation7 + $0x24] sm:$0xf]
    %v97 = vld [vmem:[#allocation7 + $0x28] sm:$0xf]
    %v98 = vld [vmem:[#allocation7 + $0x2c] sm:$0xf]
    %v99 = vld [vmem:[#allocation7 + $0x30] sm:$0xf]
    %v100 = vld [vmem:[#allocation7 + $0x34] sm:$0xf]
    %v101 = vld [vmem:[#allocation7 + $0x38] sm:$0xf]
    %v102 = vld [vmem:[#allocation7 + $0x3c] sm:$0xf]
    %v103 = vld [vmem:[#allocation9] sm:$0x1]
    %v105 = vlaneseq
    %v106 = vshrl.u32 %v105, 7
    %v107 = vsub.s32 0, %v106
    %v108 = vrot.slane %v103, %v107
    %v114 = vunpack.c.l.b16 %v83
    %v115 = vunpack.c.l.b16 %v84
    %v116 = vunpack.c.l.b16 %v85
    %v117 = vunpack.c.l.b16 %v86
    %v118 = vpack.c.b16 %v115, %v114
    %v119 = vpack.c.b16 %v117, %v116
    %v138 = vunpack.c.l.b16 %v87
    %v139 = vunpack.c.l.b16 %v88
    %v140 = vunpack.c.l.b16 %v89
    %v141 = vunpack.c.l.b16 %v90
    %v142 = vunpack.c.l.b16 %v91
    %v143 = vunpack.c.l.b16 %v92
    %v144 = vunpack.c.l.b16 %v93
    %v145 = vunpack.c.l.b16 %v94
    %v146 = vunpack.c.l.b16 %v95
    %v147 = vunpack.c.l.b16 %v96
    %v148 = vunpack.c.l.b16 %v97
    %v149 = vunpack.c.l.b16 %v98
    %v150 = vunpack.c.l.b16 %v99
    %v151 = vunpack.c.l.b16 %v100
    %v152 = vunpack.c.l.b16 %v101
    %v153 = vunpack.c.l.b16 %v102
    %v154 = vpack.c.b16 %v139, %v138
    %v155 = vpack.c.b16 %v141, %v140
    %v156 = vpack.c.b16 %v143, %v142
    %v157 = vpack.c.b16 %v145, %v144
    %v158 = vpack.c.b16 %v147, %v146
    %v159 = vpack.c.b16 %v149, %v148
    %v160 = vpack.c.b16 %v151, %v150
    %v161 = vpack.c.b16 %v153, %v152
    %170 = vmatprep.subr.bf16.mxu0 0
    %171 = vmatpush1.bf16.msra.mxu0 %v154
    %172 = vmatprep.subr.bf16.mxu0 0
    %173 = vmatpush1.bf16.msra.mxu0 %v155
    %174 = vmatprep.subr.bf16.mxu0 0
    %175 = vmatpush1.bf16.msra.mxu0 %v156
    %176 = vmatprep.subr.bf16.mxu0 0
    %177 = vmatpush1.bf16.msra.mxu0 %v157
    %178 = vmatprep.subr.bf16.mxu0 0
    %179 = vmatpush1.bf16.msra.mxu0 %v158
    %180 = vmatprep.subr.bf16.mxu0 0
    %181 = vmatpush1.bf16.msra.mxu0 %v159
    %182 = vmatprep.subr.bf16.mxu0 0
    %183 = vmatpush1.bf16.msra.mxu0 %v160
    %184 = vmatprep.subr.bf16.mxu0 0
    %185 = vmatpush1.bf16.msra.mxu0 %v161
    %186 = vmatprep.subr.bf16.mxu0 0
    %187 = vmatpush1.bf16.msra.mxu0 0
    %188 = vmatprep.subr.bf16.mxu0 0
    %189 = vmatpush1.bf16.msra.mxu0 0
    %190 = vmatprep.subr.bf16.mxu0 0
    %191 = vmatpush1.bf16.msra.mxu0 0
    %192 = vmatprep.subr.bf16.mxu0 0
    %193 = vmatpush1.bf16.msra.mxu0 0
    %194 = vmatprep.subr.bf16.mxu0 0
    %195 = vmatpush1.bf16.msra.mxu0 0
    %196 = vmatprep.subr.bf16.mxu0 0
    %197 = vmatpush1.bf16.msra.mxu0 0
    %198 = vmatprep.subr.bf16.mxu0 0
    %199 = vmatpush1.bf16.msra.mxu0 0
    %200 = vmatprep.subr.bf16.mxu0 0
    %201 = vmatpush1.bf16.msra.mxu0 0
    %202 = vmatprep.mubr.bf16.mxu0 0
    %203 = vmatmul.mubr.bf16.gmra.mrb[0].mxu0 %v118
    %v204 = vpop.f32.mrb[0].mxu0
    %v205 = vadd.f32 %v108, %v204
    %v206 = vpop.f32.mrb[0].mxu0
    %v207 = vpop.f32.mrb[0].mxu0
    %v208 = vadd.f32 %v108, %v207
    %v209 = vpop.f32.mrb[0].mxu0
    %210 = vmatprep.mubr.bf16.mxu0 0
    %211 = vmatmul.mubr.bf16.gmra.mrb[0].mxu0 %v119
    %v212 = vpop.f32.mrb[0].mxu0
    %v213 = vadd.f32 %v108, %v212
    %v214 = vpop.f32.mrb[0].mxu0
    %v215 = vpop.f32.mrb[0].mxu0
    %v216 = vadd.f32 %v108, %v215
    %v217 = vpop.f32.mrb[0].mxu0
    %218 = vdwg.mxu0
    %v219 = vmul.f32 %v205, %v205
    %v220 = vmul.f32 %v208, %v208
    %v221 = vmul.f32 %v213, %v213
    %v222 = vmul.f32 %v216, %v216
    %v223 = vmul.f32 %v205, %v219
    %v224 = vmul.f32 %v208, %v220
    %v225 = vmul.f32 %v213, %v221
    %v226 = vmul.f32 %v216, %v222
    %v227 = vmul.f32 %v223, 0.044715
    %v228 = vmul.f32 %v224, 0.044715
    %v229 = vmul.f32 %v225, 0.044715
    %v230 = vmul.f32 %v226, 0.044715
    %v231 = vadd.f32 %v205, %v227
    %v232 = vadd.f32 %v208, %v228
    %v233 = vadd.f32 %v213, %v229
    %v234 = vadd.f32 %v216, %v230
    %v235 = vmul.f32 %v231, 0.7978846
    %v236 = vmul.f32 %v232, 0.7978846
    %v237 = vmul.f32 %v233, 0.7978846
    %v238 = vmul.f32 %v234, 0.7978846
    %v239 = vtanh.pop %v235
    %v240 = vtanh.pop %v236
    %v241 = vtanh.pop %v237
    %v242 = vtanh.pop %v238
    %v243 = vadd.f32 %v239, 1.0
    %v244 = vadd.f32 %v240, 1.0
    %v245 = vadd.f32 %v241, 1.0
    %v246 = vadd.f32 %v242, 1.0
    %v247 = vmul.f32 %v243, 0.5
    %v248 = vmul.f32 %v244, 0.5
    %v249 = vmul.f32 %v245, 0.5
    %v250 = vmul.f32 %v246, 0.5
    %v251 = vmul.f32 %v205, %v247
    %v252 = vmul.f32 %v208, %v248
    %v253 = vmul.f32 %v213, %v249
    %v254 = vmul.f32 %v216, %v250
    %v255 = vpack.c.bf16 %v252, %v251
    %v256 = vpack.c.bf16 %v254, %v253
    %v257 = vld [vmem:[%s4] sm:$0xf]
    %v258 = vld [vmem:[%s4 + $0x4] sm:$0xf]
    %v259 = vld [vmem:[%s4 + $0x8] sm:$0xf]
    %v260 = vld [vmem:[%s4 + $0xc] sm:$0xf]
    %v261 = vld [vmem:[%s4 + $0x10] sm:$0xf]
    %v262 = vld [vmem:[%s4 + $0x14] sm:$0xf]
    %v263 = vld [vmem:[%s4 + $0x18] sm:$0xf]
    %v264 = vld [vmem:[%s4 + $0x1c] sm:$0xf]
    %v265 = vld [vmem:[%s4 + $0x20] sm:$0xf]
    %v266 = vld [vmem:[%s4 + $0x24] sm:$0xf]
    %v267 = vld [vmem:[%s4 + $0x28] sm:$0xf]
    %v268 = vld [vmem:[%s4 + $0x2c] sm:$0xf]
    %v269 = vld [vmem:[%s4 + $0x30] sm:$0xf]
    %v270 = vld [vmem:[%s4 + $0x34] sm:$0xf]
    %v271 = vld [vmem:[%s4 + $0x38] sm:$0xf]
    %v272 = vld [vmem:[%s4 + $0x3c] sm:$0xf]
    %v273 = vld [vmem:[%s5] sm:$0x1]
    %v275 = vlaneseq
    %v276 = vshrl.u32 %v275, 7
    %v277 = vsub.s32 0, %v276
    %v278 = vrot.slane %v273, %v277
    %v296 = vunpack.c.l.b16 %v257
    %v297 = vunpack.c.l.b16 %v258
    %v298 = vunpack.c.l.b16 %v259
    %v299 = vunpack.c.l.b16 %v260
    %v300 = vunpack.c.l.b16 %v261
    %v301 = vunpack.c.l.b16 %v262
    %v302 = vunpack.c.l.b16 %v263
    %v303 = vunpack.c.l.b16 %v264
    %v304 = vunpack.c.l.b16 %v265
    %v305 = vunpack.c.l.b16 %v266
    %v306 = vunpack.c.l.b16 %v267
    %v307 = vunpack.c.l.b16 %v268
    %v308 = vunpack.c.l.b16 %v269
    %v309 = vunpack.c.l.b16 %v270
    %v310 = vunpack.c.l.b16 %v271
    %v311 = vunpack.c.l.b16 %v272
    %v312 = vpack.c.b16 %v297, %v296
    %v313 = vpack.c.b16 %v299, %v298
    %v314 = vpack.c.b16 %v301, %v300
    %v315 = vpack.c.b16 %v303, %v302
    %v316 = vpack.c.b16 %v305, %v304
    %v317 = vpack.c.b16 %v307, %v306
    %v318 = vpack.c.b16 %v309, %v308
    %v319 = vpack.c.b16 %v311, %v310
    %328 = vmatprep.subr.bf16.mxu0 0
    %329 = vmatpush1.bf16.msra.mxu0 %v312
    %330 = vmatprep.subr.bf16.mxu0 0
    %331 = vmatpush1.bf16.msra.mxu0 %v313
    %332 = vmatprep.subr.bf16.mxu0 0
    %333 = vmatpush1.bf16.msra.mxu0 %v314
    %334 = vmatprep.subr.bf16.mxu0 0
    %335 = vmatpush1.bf16.msra.mxu0 %v315
    %336 = vmatprep.subr.bf16.mxu0 0
    %337 = vmatpush1.bf16.msra.mxu0 %v316
    %338 = vmatprep.subr.bf16.mxu0 0
    %339 = vmatpush1.bf16.msra.mxu0 %v317
    %340 = vmatprep.subr.bf16.mxu0 0
    %341 = vmatpush1.bf16.msra.mxu0 %v318
    %342 = vmatprep.subr.bf16.mxu0 0
    %343 = vmatpush1.bf16.msra.mxu0 %v319
    %344 = vmatprep.subr.bf16.mxu0 0
    %345 = vmatpush1.bf16.msra.mxu0 0
    %346 = vmatprep.subr.bf16.mxu0 0
    %347 = vmatpush1.bf16.msra.mxu0 0
    %348 = vmatprep.subr.bf16.mxu0 0
    %349 = vmatpush1.bf16.msra.mxu0 0
    %350 = vmatprep.subr.bf16.mxu0 0
    %351 = vmatpush1.bf16.msra.mxu0 0
    %352 = vmatprep.subr.bf16.mxu0 0
    %353 = vmatpush1.bf16.msra.mxu0 0
    %354 = vmatprep.subr.bf16.mxu0 0
    %355 = vmatpush1.bf16.msra.mxu0 0
    %356 = vmatprep.subr.bf16.mxu0 0
    %357 = vmatpush1.bf16.msra.mxu0 0
    %358 = vmatprep.subr.bf16.mxu0 0
    %359 = vmatpush1.bf16.msra.mxu0 0
    %360 = vmatprep.mubr.bf16.mxu0 0
    %361 = vmatmul.mubr.bf16.gmra.mrb[0].mxu0 %v255
    %v362 = vpop.f32.mrb[0].mxu0
    %v363 = vadd.f32 %v278, %v362
    %v364 = vpop.f32.mrb[0].mxu0
    %v365 = vpop.f32.mrb[0].mxu0
    %v366 = vadd.f32 %v278, %v365
    %v367 = vpop.f32.mrb[0].mxu0
    %368 = vmatprep.mubr.bf16.mxu0 0
    %369 = vmatmul.mubr.bf16.gmra.mrb[0].mxu0 %v256
    %v370 = vpop.f32.mrb[0].mxu0
    %v371 = vadd.f32 %v278, %v370
    %v372 = vpop.f32.mrb[0].mxu0
    %v373 = vpop.f32.mrb[0].mxu0
    %v374 = vadd.f32 %v278, %v373
    %v375 = vpop.f32.mrb[0].mxu0
    %376 = vdwg.mxu0
    %v377 = vld [vmem:[%s6] sm:$0xff]
    %v378 = vld [vmem:[%s6 + $0x8] sm:$0xff]
    %v379 = vld [vmem:[%s6 + $0x10] sm:$0xff]
    %v380 = vld [vmem:[%s6 + $0x18] sm:$0xff]
    %v381 = vld [vmem:[%s6 + $0x20] sm:$0xff]
    %v382 = vld [vmem:[%s6 + $0x28] sm:$0xff]
    %vm383 = vcmp.gt.s32.totalorder %v377, 0
    %v384 = vsel %vm383, %v377, 0
    %vm385 = vcmp.gt.s32.totalorder %v378, 0
    %v386 = vsel %vm385, %v378, 0
    %vm387 = vcmp.gt.s32.totalorder %v379, 0
    %v388 = vsel %vm387, %v379, 0
    %vm389 = vcmp.gt.s32.totalorder %v380, 0
    %v390 = vsel %vm389, %v380, 0
    %vm391 = vcmp.gt.s32.totalorder %v381, 0
    %v392 = vsel %vm391, %v381, 0
    %vm393 = vcmp.gt.s32.totalorder %v382, 0
    %v394 = vsel %vm393, %v382, 0
    %vm395 = vcmp.lt.s32.totalorder %v384, 127
    %v396 = vsel %vm395, %v384, 127
    %vm397 = vcmp.lt.s32.totalorder %v386, 127
    %v398 = vsel %vm397, %v386, 127
    %vm399 = vcmp.lt.s32.totalorder %v388, 127
    %v400 = vsel %vm399, %v388, 127
    %vm401 = vcmp.lt.s32.totalorder %v390, 127
    %v402 = vsel %vm401, %v390, 127
    %vm403 = vcmp.lt.s32.totalorder %v392, 127
    %v404 = vsel %vm403, %v392, 127
    %vm405 = vcmp.lt.s32.totalorder %v394, 127
    %v406 = vsel %vm405, %v394, 127
    %v407 = vlaneseq
    %v408 = vand.u32 %v407, 127
    %409 = vset.pattern.permute.xlu0 0
    %410 = vperm.xlu0 %409, %v396
    %v411 = vpop.permute.xlu0 %410
    %412 = vset.pattern.permute.xlu0 0
    %413 = vperm.xlu0 %412, %v398
    %v414 = vpop.permute.xlu0 %413
    %415 = vset.pattern.permute.xlu0 0
    %416 = vperm.xlu0 %415, %v400
    %v417 = vpop.permute.xlu0 %416
    %418 = vset.pattern.permute.xlu0 0
    %419 = vperm.xlu0 %418, %v402
    %v420 = vpop.permute.xlu0 %419
    %421 = vset.pattern.permute.xlu0 0
    %422 = vperm.xlu0 %421, %v404
    %v423 = vpop.permute.xlu0 %422
    %424 = vset.pattern.permute.xlu0 0
    %425 = vperm.xlu0 %424, %v406
    %v426 = vpop.permute.xlu0 %425
    %vm427 = vcmp.eq.s32.totalorder %v408, %v411
    %vm428 = vcmp.eq.s32.totalorder %v408, %v414
    %vm429 = vcmp.eq.s32.totalorder %v408, %v417
    %vm430 = vcmp.eq.s32.totalorder %v408, %v420
    %vm431 = vcmp.eq.s32.totalorder %v408, %v423
    %vm432 = vcmp.eq.s32.totalorder %v408, %v426
    %v433 = vsel %vm427, 1, 0
    %v434 = vsel %vm428, 1, 0
    %v435 = vsel %vm429, 1, 0
    %v436 = vsel %vm430, 1, 0
    %v437 = vsel %vm431, 1, 0
    %v438 = vsel %vm432, 1, 0
    %v439 = vcvt.s32.f32 %v433
    %v440 = vcvt.s32.f32 %v434
    %v441 = vcvt.s32.f32 %v435
    %v442 = vcvt.s32.f32 %v436
    %v443 = vcvt.s32.f32 %v437
    %v444 = vcvt.s32.f32 %v438
    %v445 = vpack.c.bf16 %v440, %v439
    %v446 = vpack.c.bf16 %v442, %v441
    %v447 = vpack.c.bf16 %v444, %v443
    %v448 = vld [vmem:[#allocation10] sm:$0xf]
    %v449 = vld [vmem:[#allocation10 + $0x4] sm:$0xf]
    %v450 = vld [vmem:[#allocation10 + $0x8] sm:$0xf]
    %v451 = vld [vmem:[#allocation10 + $0xc] sm:$0xf]
    %v452 = vld [vmem:[#allocation10 + $0x10] sm:$0xf]
    %v453 = vld [vmem:[#allocation10 + $0x14] sm:$0xf]
    %v454 = vld [vmem:[#allocation10 + $0x18] sm:$0xf]
    %v455 = vld [vmem:[#allocation10 + $0x1c] sm:$0xf]
    %v456 = vld [vmem:[#allocation10 + $0x20] sm:$0xf]
    %v457 = vld [vmem:[#allocation10 + $0x24] sm:$0xf]
    %v458 = vld [vmem:[#allocation10 + $0x28] sm:$0xf]
    %v459 = vld [vmem:[#allocation10 + $0x2c] sm:$0xf]
    %v460 = vld [vmem:[#allocation10 + $0x30] sm:$0xf]
    %v461 = vld [vmem:[#allocation10 + $0x34] sm:$0xf]
    %v462 = vld [vmem:[#allocation10 + $0x38] sm:$0xf]
    %v463 = vld [vmem:[#allocation10 + $0x3c] sm:$0xf]
    %v480 = vunpack.c.l.b16 %v448
    %v481 = vunpack.c.l.b16 %v449
    %v482 = vunpack.c.l.b16 %v450
    %v483 = vunpack.c.l.b16 %v451
    %v484 = vunpack.c.l.b16 %v452
    %v485 = vunpack.c.l.b16 %v453
    %v486 = vunpack.c.l.b16 %v454
    %v487 = vunpack.c.l.b16 %v455
    %v488 = vunpack.c.l.b16 %v456
    %v489 = vunpack.c.l.b16 %v457
    %v490 = vunpack.c.l.b16 %v458
    %v491 = vunpack.c.l.b16 %v459
    %v492 = vunpack.c.l.b16 %v460
    %v493 = vunpack.c.l.b16 %v461
    %v494 = vunpack.c.l.b16 %v462
    %v495 = vunpack.c.l.b16 %v463
    %v496 = vpack.c.b16 %v481, %v480
    %v497 = vpack.c.b16 %v483, %v482
    %v498 = vpack.c.b16 %v485, %v484
    %v499 = vpack.c.b16 %v487, %v486
    %v500 = vpack.c.b16 %v489, %v488
    %v501 = vpack.c.b16 %v491, %v490
    %v502 = vpack.c.b16 %v493, %v492
    %v503 = vpack.c.b16 %v495, %v494
    %512 = vmatprep.subr.bf16.mxu0 0
    %513 = vmatpush1.bf16.msra.mxu0 %v496
    %514 = vmatprep.subr.bf16.mxu0 0
    %515 = vmatpush1.bf16.msra.mxu0 %v497
    %516 = vmatprep.subr.bf16.mxu0 0
    %517 = vmatpush1.bf16.msra.mxu0 %v498
    %518 = vmatprep.subr.bf16.mxu0 0
    %519 = vmatpush1.bf16.msra.mxu0 %v499
    %520 = vmatprep.subr.bf16.mxu0 0
    %521 = vmatpush1.bf16.msra.mxu0 %v500
    %522 = vmatprep.subr.bf16.mxu0 0
    %523 = vmatpush1.bf16.msra.mxu0 %v501
    %524 = vmatprep.subr.bf16.mxu0 0
    %525 = vmatpush1.bf16.msra.mxu0 %v502
    %526 = vmatprep.subr.bf16.mxu0 0
    %527 = vmatpush1.bf16.msra.mxu0 %v503
    %528 = vmatprep.subr.bf16.mxu0 0
    %529 = vmatpush1.bf16.msra.mxu0 0
    %530 = vmatprep.subr.bf16.mxu0 0
    %531 = vmatpush1.bf16.msra.mxu0 0
    %532 = vmatprep.subr.bf16.mxu0 0
    %533 = vmatpush1.bf16.msra.mxu0 0
    %534 = vmatprep.subr.bf16.mxu0 0
    %535 = vmatpush1.bf16.msra.mxu0 0
    %536 = vmatprep.subr.bf16.mxu0 0
    %537 = vmatpush1.bf16.msra.mxu0 0
    %538 = vmatprep.subr.bf16.mxu0 0
    %539 = vmatpush1.bf16.msra.mxu0 0
    %540 = vmatprep.subr.bf16.mxu0 0
    %541 = vmatpush1.bf16.msra.mxu0 0
    %542 = vmatprep.subr.bf16.mxu0 0
    %543 = vmatpush1.bf16.msra.mxu0 0
    %544 = vmatprep.mubr.bf16.mxu0 0
    %545 = vmatmul.mubr.bf16.gmra.mrb[0].mxu0 %v445
    %v546 = vpop.f32.mrb[0].mxu0
    %v547 = vadd.f32 0.0, %v546
    %v548 = vpop.f32.mrb[0].mxu0
    %v549 = vpop.f32.mrb[0].mxu0
    %v550 = vadd.f32 0.0, %v549
    %v551 = vpop.f32.mrb[0].mxu0
    %552 = vmatprep.mubr.bf16.mxu0 0
    %553 = vmatmul.mubr.bf16.gmra.mrb[0].mxu0 %v446
    %v554 = vpop.f32.mrb[0].mxu0
    %v555 = vadd.f32 0.0, %v554
    %v556 = vpop.f32.mrb[0].mxu0
    %v557 = vpop.f32.mrb[0].mxu0
    %v558 = vadd.f32 0.0, %v557
    %v559 = vpop.f32.mrb[0].mxu0
    %560 = vmatprep.mubr.bf16.mxu0 0
    %561 = vmatmul.mubr.bf16.gmra.mrb[0].mxu0 %v447
    %v562 = vpop.f32.mrb[0].mxu0
    %v563 = vadd.f32 0.0, %v562
    %v564 = vpop.f32.mrb[0].mxu0
    %v565 = vpop.f32.mrb[0].mxu0
    %v566 = vadd.f32 0.0, %v565
    %v567 = vpop.f32.mrb[0].mxu0
    %568 = vdwg.mxu0
    %569 = vst [vmem:[#allocation12] sm:$0xff] %v547
    %570 = vst [vmem:[#allocation12 + $0x8] sm:$0xff] %v550
    %571 = vst [vmem:[#allocation12 + $0x10] sm:$0xff] %v555
    %572 = vst [vmem:[#allocation12 + $0x18] sm:$0xff] %v558
    %573 = vst [vmem:[#allocation12 + $0x20] sm:$0xff] %v563
    %574 = vst [vmem:[#allocation12 + $0x28] sm:$0xff] %v566
    %s575 = sld [smem:[#allocation3]]
    %p576 = scmp.gt.s32.totalorder %s575, 0
    %s577 = scalar_select %p576, %s575, 0
    %p578 = scmp.lt.s32.totalorder %s577, 16
    %s579 = scalar_select %p578, %s577, 16
    %s580 = scalar_lea.vmem [#allocation12], %s579
    %581 = vst [vmem:[%s580] sm:$0xff] %v363
    %582 = vst [vmem:[%s580 + $0x8] sm:$0xff] %v366
    %583 = vst [vmem:[%s580 + $0x10] sm:$0xff] %v371
    %584 = vst [vmem:[%s580 + $0x18] sm:$0xff] %v374
    // Predicated region
    $region46: #{tpu_custom_call.1} parent=1 // pred_check
      _
    $region47: #{tpu_custom_call.1} parent=1 // pred_check_branch
      %586 = sbr.rel (0) target = $region49
    $region48: #{tpu_custom_call.1} parent=1 // pred_region
      %s588 = ssub.s32 768, 768
      %589 = vsyncadd [#allocation6], %s588
      %s590 = sshll.u32 [#allocation12], 4
      %s591 = int_to_ptr.vmem [resolvable:$true] %s590
      %596 = dma.vmem_to_hbm [thread:$0]  %s591, 768, %s8, [#allocation6], 128, 128, 8
    $region49: #{tpu_custom_call.1} parent=1 // pred_fallthru
      _
    // Predicated region
    $region50: #{tpu_custom_call.1} parent=1 // pred_check
      _
    $region51: #{tpu_custom_call.1} parent=1 // pred_check_branch
      %598 = sbr.rel (0) target = $region53
    $region52: #{tpu_custom_call.1} parent=1 // pred_region
      %599 = dma.done [#allocation6], 768
    $region53: #{tpu_custom_call.1} parent=1 // pred_fallthru
      _
    %600 = vsyncpa [#allocation5], 1
    %601 = vsyncpa [#allocation8], 1
    %602 = vsyncpa [#allocation11], 1
    %603 = vsyncpa [#allocation6], 1

</llo_original>
